<compile_context>
chip_gen: v5e
topology: v5e:2x2
jax: 0.10.0
libtpu: 0.0.40
codegen_flags: <defaults>
</compile_context>

<pallas_src>
import numpy as np
import jax
import jax.numpy as jnp
from jax.experimental import pallas as pl
from jax.experimental.pallas import tpu as pltpu

LANES = 128


def _round_up(n, m):
    return ((n + m - 1) // m) * m


def critic_kernel(x_ref, w1_ref, b1_ref, w2_ref, b2_ref, wl_ref, bl_ref, out_ref):
    # x:  [TB, in_dim_pad]  (bf16 or f32)      w1: [in_dim_pad, H1p]  (same dtype as x)
    # b1: [1, H1p] f32                          w2: [H1p, H2p]
    # b2: [1, H2p] f32                          wl: [1, H2p] f32 (last-layer weights, row vector)
    # bl: [1, 1] f32                            out: [TB, 1] f32
    h = jnp.dot(x_ref[...], w1_ref[...], preferred_element_type=jnp.float32)
    h = jnp.maximum(h + b1_ref[...], 0.0)                       # f32 bias + ReLU (hidden 1)

    h = jnp.dot(h.astype(w2_ref.dtype), w2_ref[...],
                preferred_element_type=jnp.float32)
    h = jnp.maximum(h + b2_ref[...], 0.0)                       # f32 bias + ReLU (hidden 2)

    # Scalar head: only one real output column -> VPU multiply + XLU lane reduction
    # instead of a 128-wide MXU dot. Produces the narrow (TB, 1) result directly.
    q = jnp.sum(h * wl_ref[...], axis=-1, keepdims=True) + bl_ref[...]
    out_ref[...] = q.astype(out_ref.dtype)


def pack_critic_params(params, obs_dim, action_dim, dtype=jnp.bfloat16):
    """Pack Critic weights for the kernel (done once at init, off the hot path).

    * W1 stays a single (in_dim_pad, H1p) matrix (first layer is one fused dot on obs||act).
    * Hidden dims are zero-padded to 128 lanes (exact for matmul + bias + ReLU).
    * Matmul weights (w1, w2) are stored in `dtype` (bf16 by default: MXU-native on
      v5e/v6e/v7x); biases and the last-layer row stay f32 (VPU math stays f32).
    """
    w1, b1, w2, b2, wl, bl = params
    in_dim = obs_dim + action_dim
    assert w1.shape[0] == in_dim
    H1, H2 = w1.shape[1], w2.shape[1]
    in_dim_pad = _round_up(in_dim, 8)
    H1p, H2p = _round_up(H1, LANES), _round_up(H2, LANES)

    def pad2(a, rows, cols):
        return jnp.pad(a, ((0, rows - a.shape[0]), (0, cols - a.shape[1])))

    w1p = pad2(w1, in_dim_pad, H1p).astype(dtype)
    b1p = pad2(b1, 1, H1p).astype(jnp.float32)
    w2p = pad2(w2, H1p, H2p).astype(dtype)
    b2p = pad2(b2, 1, H2p).astype(jnp.float32)
    wl_row = pad2(wl.T, 1, H2p).astype(jnp.float32)       # (1, H2p): real weights, zero padding
    blp = jnp.reshape(bl, (1, 1)).astype(jnp.float32)      # scalar bias
    return (w1p, b1p, w2p, b2p, wl_row, blp)


def critic_forward(obs, actions, packed_params, *, tile_b=2048):
    """obs: [B, obs_dim], actions: [B, action_dim] -> Q values [B, 1] float32."""
    w1, b1, w2, b2, wl_row, bl = packed_params
    B, obs_dim = obs.shape
    action_dim = actions.shape[1]
    in_dim = obs_dim + action_dim
    in_dim_pad, H1p = w1.shape
    H2p = w2.shape[1]
    x_dtype = w1.dtype

    # Batch tiling: multiples of 8 sublanes; for large batches ensure >= 2 grid steps so the
    # "parallel" batch axis can be sharded across both TensorCores on v7x.
    b8 = _round_up(max(B, 1), 8)
    tb = max(8, min(int(tile_b), b8))
    if b8 >= 256:
        tb = min(tb, _round_up((b8 + 1) // 2, 8))
    tb = _round_up(tb, 8)
    B_pad = _round_up(B, tb)
    n_tiles = B_pad // tb

    # One fused copy: concat(obs, actions) + batch/feature pad + cast to the MXU dtype.
    # (Callers that can pass a pre-packed bf16 obs||act slab avoid even this copy.)
    x = jnp.concatenate([obs, actions], axis=1)
    x = jnp.pad(x, ((0, B_pad - B), (0, in_dim_pad - in_dim))).astype(x_dtype)

    resident = lambda a: pl.BlockSpec(a.shape, lambda i: (0, 0))  # stays in VMEM across tiles

    flops = 2 * B_pad * (in_dim_pad * H1p + H1p * H2p + H2p)
    bytes_accessed = int(
        x.size * x.dtype.itemsize                       # input tiles (bf16)
        + B_pad * 4                                     # narrow (B_pad, 1) f32 output
        + sum(int(np.prod(a.shape)) * a.dtype.itemsize for a in packed_params))
    cost = pl.CostEstimate(flops=int(flops), transcendentals=0,
                           bytes_accessed=bytes_accessed)

    q_pad = pl.pallas_call(
        critic_kernel,
        out_shape=jax.ShapeDtypeStruct((B_pad, 1), jnp.float32),
        grid=(n_tiles,),
        in_specs=[
            pl.BlockSpec((tb, in_dim_pad), lambda i: (i, 0)),
            resident(w1), resident(b1),
            resident(w2), resident(b2),
            resident(wl_row), resident(bl),
        ],
        out_specs=pl.BlockSpec((tb, 1), lambda i: (i, 0)),
        compiler_params=pltpu.CompilerParams(
            dimension_semantics=("parallel",)),
        cost_estimate=cost,
    )(x, w1, b1, w2, b2, wl_row, bl)

    return q_pad[:B]


def init_params(key, input_dim, hidden_dims, out_dim=1):
    """Deterministic PyTorch-style init: U(-1/sqrt(fan_in), 1/sqrt(fan_in))."""
    params = []
    dims = [input_dim] + list(hidden_dims) + [out_dim]
    for i in range(len(dims) - 1):
        fan_in, fan_out = dims[i], dims[i + 1]
        key, kw, kb = jax.random.split(key, 3)
        bound = 1.0 / np.sqrt(fan_in)
        w = jax.random.uniform(kw, (fan_in, fan_out), jnp.float32, -bound, bound)
        b = jax.random.uniform(kb, (1, fan_out), jnp.float32, -bound, bound)
        params += [w, b]
    return tuple(params)


def critic_reference(obs, actions, params):
    """Plain-JAX reference mirroring the PyTorch forward."""
    x = jnp.concatenate([obs, actions], axis=1)
    w1, b1, w2, b2, wl, bl = params
    h = jnp.maximum(x @ w1 + b1, 0.0)
    h = jnp.maximum(h @ w2 + b2, 0.0)
    return h @ wl + bl


if __name__ == "__main__":
    # Shapes consistent with the module: obs_shape=(4,4) -> obs_dim=16, action_dim=8, hidden=[32,32]
    B = 8
    obs_shape = (4, 4)
    obs_dim = int(np.prod(obs_shape))
    action_dim = 8
    hidden_dims = [32, 32]

    key = jax.random.PRNGKey(0)
    k_obs, k_act, k_par, k_obs2, k_act2 = jax.random.split(key, 5)

    obs = jax.random.normal(k_obs, (B, obs_dim), jnp.float32)
    actions = jax.random.normal(k_act, (B, action_dim), jnp.float32)
    params = init_params(k_par, obs_dim + action_dim, hidden_dims, out_dim=1)
    q_ref = critic_reference(obs, actions, params)

    # f32-weight path (single tile) — tight numerical check of the kernel structure.
    packed_f32 = pack_critic_params(params, obs_dim, action_dim, dtype=jnp.float32)
    q = jax.block_until_ready(critic_forward(obs, actions, packed_f32))
    assert q.shape == (B, 1), q.shape
    np.testing.assert_allclose(np.asarray(q), np.asarray(q_ref), rtol=1e-4, atol=1e-5)

    # bf16 MXU path (production default) — looser tolerance from bf16 operand rounding only.
    packed_bf16 = pack_critic_params(params, obs_dim, action_dim)
    qb = jax.block_until_ready(critic_forward(obs, actions, packed_bf16))
    np.testing.assert_allclose(np.asarray(qb), np.asarray(q_ref), rtol=2e-2, atol=3e-2)

    # Multi-tile grid + batch-padding path (exercises the pipelined, parallel batch grid).
    B2 = 1000
    obs2 = jax.random.normal(k_obs2, (B2, obs_dim), jnp.float32)
    act2 = jax.random.normal(k_act2, (B2, action_dim), jnp.float32)
    q2 = jax.block_until_ready(critic_forward(obs2, act2, packed_bf16, tile_b=256))
    q2_ref = critic_reference(obs2, act2, params)
    assert q2.shape == (B2, 1), q2.shape
    np.testing.assert_allclose(np.asarray(q2), np.asarray(q2_ref), rtol=2e-2, atol=3e-2)

    print("KERNEL_OK")
</pallas_src>

<mosaic_0001>
module attributes {stable_mosaic.version = 11 : i64} {
  func.func @critic_kernel(%arg0: i32, %arg1: memref<8x24xf32, #tpu.memory_space<vmem>>, %arg2: memref<24x128xf32, #tpu.memory_space<vmem>>, %arg3: memref<1x128xf32, #tpu.memory_space<vmem>>, %arg4: memref<128x128xf32, #tpu.memory_space<vmem>>, %arg5: memref<1x128xf32, #tpu.memory_space<vmem>>, %arg6: memref<1x128xf32, #tpu.memory_space<vmem>>, %arg7: memref<1x1xf32, #tpu.memory_space<vmem>>, %arg8: memref<8x1xf32, #tpu.memory_space<vmem>>) attributes {dimension_semantics = [#tpu.dimension_semantics<parallel>], iteration_bounds = array<i64: 1>, scalar_prefetch = 0 : i64, scratch_operands = 0 : i64, tpu.core_type = #tpu.core_type<tc>, window_params = [{transform_indices = @transform_0, window_bounds = array<i64: 8, 24>}, {pipeline_mode = #tpu.pipeline_mode<synchronous>, transform_indices = @transform_1, window_bounds = array<i64: 24, 128>}, {pipeline_mode = #tpu.pipeline_mode<synchronous>, transform_indices = @transform_2, window_bounds = array<i64: 1, 128>}, {pipeline_mode = #tpu.pipeline_mode<synchronous>, transform_indices = @transform_3, window_bounds = array<i64: 128, 128>}, {pipeline_mode = #tpu.pipeline_mode<synchronous>, transform_indices = @transform_4, window_bounds = array<i64: 1, 128>}, {pipeline_mode = #tpu.pipeline_mode<synchronous>, transform_indices = @transform_5, window_bounds = array<i64: 1, 128>}, {pipeline_mode = #tpu.pipeline_mode<synchronous>, transform_indices = @transform_6, window_bounds = array<i64: 1, 1>}, {transform_indices = @transform_7, window_bounds = array<i64: 8, 1>}]} {
    %c0 = arith.constant 0 : index
    %c0_0 = arith.constant 0 : index
    %0 = vector.load %arg1[%c0, %c0_0] : memref<8x24xf32, #tpu.memory_space<vmem>>, vector<8x24xf32>
    %c0_1 = arith.constant 0 : index
    %c0_2 = arith.constant 0 : index
    %1 = vector.load %arg2[%c0_1, %c0_2] : memref<24x128xf32, #tpu.memory_space<vmem>>, vector<24x128xf32>
    %cst = arith.constant dense<0.000000e+00> : vector<8x128xf32>
    %2 = tpu.matmul %0, %1, %cst {dimension_numbers = #tpu.dot_dimension_numbers<[1], [0], [0], [1], [0, 0, 1, 1], [], []>} : vector<8x24xf32>, vector<24x128xf32>, vector<8x128xf32> -> vector<8x128xf32>
    %c0_3 = arith.constant 0 : index
    %c0_4 = arith.constant 0 : index
    %3 = vector.load %arg3[%c0_3, %c0_4] : memref<1x128xf32, #tpu.memory_space<vmem>>, vector<1x128xf32>
    %4 = vector.broadcast %3 : vector<1x128xf32> to vector<8x128xf32>
    %5 = arith.addf %2, %4 : vector<8x128xf32>
    %cst_5 = arith.constant 0.000000e+00 : f32
    %6 = vector.broadcast %cst_5 : f32 to vector<8x128xf32>
    %7 = arith.maximumf %5, %6 : vector<8x128xf32>
    %c0_6 = arith.constant 0 : index
    %c0_7 = arith.constant 0 : index
    %8 = vector.load %arg4[%c0_6, %c0_7] : memref<128x128xf32, #tpu.memory_space<vmem>>, vector<128x128xf32>
    %cst_8 = arith.constant dense<0.000000e+00> : vector<8x128xf32>
    %9 = tpu.matmul %7, %8, %cst_8 {dimension_numbers = #tpu.dot_dimension_numbers<[1], [0], [0], [1], [0, 0, 1, 1], [], []>} : vector<8x128xf32>, vector<128x128xf32>, vector<8x128xf32> -> vector<8x128xf32>
    %c0_9 = arith.constant 0 : index
    %c0_10 = arith.constant 0 : index
    %10 = vector.load %arg5[%c0_9, %c0_10] : memref<1x128xf32, #tpu.memory_space<vmem>>, vector<1x128xf32>
    %11 = vector.broadcast %10 : vector<1x128xf32> to vector<8x128xf32>
    %12 = arith.addf %9, %11 : vector<8x128xf32>
    %cst_11 = arith.constant 0.000000e+00 : f32
    %13 = vector.broadcast %cst_11 : f32 to vector<8x128xf32>
    %14 = arith.maximumf %12, %13 : vector<8x128xf32>
    %c0_12 = arith.constant 0 : index
    %c0_13 = arith.constant 0 : index
    %15 = vector.load %arg6[%c0_12, %c0_13] : memref<1x128xf32, #tpu.memory_space<vmem>>, vector<1x128xf32>
    %16 = vector.broadcast %15 : vector<1x128xf32> to vector<8x128xf32>
    %17 = arith.mulf %14, %16 : vector<8x128xf32>
    %cst_14 = arith.constant dense<0.000000e+00> : vector<8xf32>
    %18 = vector.multi_reduction <add>, %17, %cst_14 [1] : vector<8x128xf32> to vector<8xf32>
    %19 = vector.shape_cast %18 : vector<8xf32> to vector<8x1xf32>
    %c0_15 = arith.constant 0 : index
    %c0_16 = arith.constant 0 : index
    %20 = vector.load %arg7[%c0_15, %c0_16] : memref<1x1xf32, #tpu.memory_space<vmem>>, vector<1x1xf32>
    %21 = vector.broadcast %20 : vector<1x1xf32> to vector<8x1xf32>
    %22 = arith.addf %19, %21 : vector<8x1xf32>
    %c0_17 = arith.constant 0 : index
    %c0_18 = arith.constant 0 : index
    %23 = vector.load %arg8[%c0_17, %c0_18] : memref<8x1xf32, #tpu.memory_space<vmem>>, vector<8x1xf32>
    tpu.vector_store %arg8[%c0_17, %c0_18], %22 {strides = array<i32>} : memref<8x1xf32, #tpu.memory_space<vmem>>, vector<8x1xf32>,
    return
  }
  func.func @transform_0(%arg0: i32) -> (i32, i32) {
    %c0_i32 = arith.constant 0 : i32
    %c0_i32_0 = arith.constant 0 : i32
    return %arg0, %c0_i32 : i32, i32
  }
  func.func @transform_1(%arg0: i32) -> (i32, i32) {
    %c0_i32 = arith.constant 0 : i32
    %c0_i32_0 = arith.constant 0 : i32
    %c0_i32_1 = arith.constant 0 : i32
    return %c0_i32, %c0_i32_0 : i32, i32
  }
  func.func @transform_2(%arg0: i32) -> (i32, i32) {
    %c0_i32 = arith.constant 0 : i32
    %c0_i32_0 = arith.constant 0 : i32
    %c0_i32_1 = arith.constant 0 : i32
    return %c0_i32, %c0_i32_0 : i32, i32
  }
  func.func @transform_3(%arg0: i32) -> (i32, i32) {
    %c0_i32 = arith.constant 0 : i32
    %c0_i32_0 = arith.constant 0 : i32
    %c0_i32_1 = arith.constant 0 : i32
    return %c0_i32, %c0_i32_0 : i32, i32
  }
  func.func @transform_4(%arg0: i32) -> (i32, i32) {
    %c0_i32 = arith.constant 0 : i32
    %c0_i32_0 = arith.constant 0 : i32
    %c0_i32_1 = arith.constant 0 : i32
    return %c0_i32, %c0_i32_0 : i32, i32
  }
  func.func @transform_5(%arg0: i32) -> (i32, i32) {
    %c0_i32 = arith.constant 0 : i32
    %c0_i32_0 = arith.constant 0 : i32
    %c0_i32_1 = arith.constant 0 : i32
    return %c0_i32, %c0_i32_0 : i32, i32
  }
  func.func @transform_6(%arg0: i32) -> (i32, i32) {
    %c0_i32 = arith.constant 0 : i32
    %c0_i32_0 = arith.constant 0 : i32
    %c0_i32_1 = arith.constant 0 : i32
    return %c0_i32, %c0_i32_0 : i32, i32
  }
  func.func @transform_7(%arg0: i32) -> (i32, i32) {
    %c0_i32 = arith.constant 0 : i32
    %c0_i32_0 = arith.constant 0 : i32
    return %arg0, %c0_i32 : i32, i32
  }
}

</mosaic_0001>

<llo_original>
// kernel: tpu_custom_call.1
$region0: #{tpu_custom_call.1}
  #allocation0 [shape = 'u32[]', space=smem, size = 0x4, offset = 0x4, fixed_abs, tag = 'smem constant byte address 0x4 - core index']
  #allocation1 [shape = 'u32[72,128]{1,0:T(1,128)}', space=vmem, size = 0x9000, scoped, tag = 'internal scratch']
  #allocation2 [shape = 'f32[1,1]{1,0:T(1,128)S(1)}', space=vmem, size = 0x200, scoped, tag = 'scoped memory for tpu_custom_call.1']
  %s0 = inlined_call_operand.hbm [shape: f32[8,24], index: 0, kind: input, shape index: {}]
  %s1 = inlined_call_operand.hbm [shape: f32[24,128], index: 1, kind: input, shape index: {}]
  %s2 = inlined_call_operand.vmem [shape: f32[1,128], index: 2, kind: input, shape index: {}]
  %s3 = inlined_call_operand.hbm [shape: f32[128,128], index: 3, kind: input, shape index: {}]
  %s4 = inlined_call_operand.vmem [shape: f32[1,128], index: 4, kind: input, shape index: {}]
  %s5 = inlined_call_operand.vmem [shape: f32[1,128], index: 5, kind: input, shape index: {}]
  %s6 = inlined_call_operand.<no memory space> [shape: f32[1,1], index: 6, kind: input, shape index: {}]
  %s7 = inlined_call_operand.vmem [shape: f32[8,1], index: 7, kind: output, shape index: {}]
  %s8 = sld [smem:[#allocation0]]
  $region50: #{tpu_custom_call.1} parent=0
    _
  %s10 = ssub.s32 1, %s8
  %s11 = scalar_select 0, %s10, %s8
  %v12 = vstv %s6
  %13 = vst [vmem:[#allocation2] sm:$0x1] %v12
  $region1: #{tpu_custom_call.1} parent=0
    #allocation3 [shape = 'u8[4096]{0}', space=vmem, size = 0x1000, scoped, tag = 'input window, operand 0, single buffered']
    #allocation4 [shape = 's32[1]{0}', space=sflag, size = 0x4, scoped, tag = 'scoped memory for tpu_custom_call.1']
    #allocation5 [shape = 'u8[12288]{0}', space=vmem, size = 0x3000, scoped, tag = 'input window, operand 1, single buffered']
    #allocation6 [shape = 's32[1]{0}', space=sflag, size = 0x4, scoped, tag = 'scoped memory for tpu_custom_call.1']
    #allocation7 [shape = 'u8[65536]{0}', space=vmem, size = 0x10000, scoped, tag = 'input window, operand 3, single buffered']
    %14 = vsyncpa [#allocation4], 0
    %15 = vsyncpa [#allocation6], 0
    // Predicated region
    $region2: #{tpu_custom_call.1} parent=1 // pred_check
      _
    $region3: #{tpu_custom_call.1} parent=1 // pred_check_branch
      %17 = sbr.rel (0) target = $region5
    $region4: #{tpu_custom_call.1} parent=1 // pred_region
      %19 = vsyncadd [#allocation4], 0
      %s21 = sshll.u32 %s0, 4
      %s22 = int_to_ptr.hbm [resolvable:$true] %s21
      %s23 = sshll.u32 [#allocation3], 4
      %s24 = int_to_ptr.vmem [resolvable:$true] %s23
      %26 = dma.hbm_to_vmem [thread:$0]  %s22, 128, %s24, [#allocation4]
    $region5: #{tpu_custom_call.1} parent=1 // pred_fallthru
      _
    // Predicated region
    $region6: #{tpu_custom_call.1} parent=1 // pred_check
      _
    $region7: #{tpu_custom_call.1} parent=1 // pred_check_branch
      %28 = sbr.rel (0) target = $region9
    $region8: #{tpu_custom_call.1} parent=1 // pred_region
      %30 = vsyncadd [#allocation6], 0
      %s31 = sshll.u32 %s1, 4
      %s32 = int_to_ptr.hbm [resolvable:$true] %s31
      %s33 = sshll.u32 [#allocation5], 4
      %s34 = int_to_ptr.vmem [resolvable:$true] %s33
      %39 = dma.hbm_to_vmem [thread:$0]  %s32, 384, %s34, [#allocation6], 128, 128, 8
    $region9: #{tpu_custom_call.1} parent=1 // pred_fallthru
      _
    // Predicated region
    $region10: #{tpu_custom_call.1} parent=1 // pred_check
      _
    $region11: #{tpu_custom_call.1} parent=1 // pred_check_branch
      %41 = sbr.rel (0) target = $region13
    $region12: #{tpu_custom_call.1} parent=1 // pred_region
      _
    $region13: #{tpu_custom_call.1} parent=1 // pred_fallthru
      _
    // Predicated region
    $region14: #{tpu_custom_call.1} parent=1 // pred_check
      _
    $region15: #{tpu_custom_call.1} parent=1 // pred_check_branch
      %43 = sbr.rel (0) target = $region17
    $region16: #{tpu_custom_call.1} parent=1 // pred_region
      %45 = vsyncadd [#allocation6], 0
      %s46 = sshll.u32 %s3, 4
      %s47 = int_to_ptr.hbm [resolvable:$true] %s46
      %s48 = sshll.u32 [#allocation7], 4
      %s49 = int_to_ptr.vmem [resolvable:$true] %s48
      %54 = dma.hbm_to_vmem [thread:$0]  %s47, 2048, %s49, [#allocation6], 128, 128, 8
    $region17: #{tpu_custom_call.1} parent=1 // pred_fallthru
      _
    // Predicated region
    $region18: #{tpu_custom_call.1} parent=1 // pred_check
      _
    $region19: #{tpu_custom_call.1} parent=1 // pred_check_branch
      %56 = sbr.rel (0) target = $region21
    $region20: #{tpu_custom_call.1} parent=1 // pred_region
      _
    $region21: #{tpu_custom_call.1} parent=1 // pred_fallthru
      _
    // Predicated region
    $region22: #{tpu_custom_call.1} parent=1 // pred_check
      _
    $region23: #{tpu_custom_call.1} parent=1 // pred_check_branch
      %58 = sbr.rel (0) target = $region25
    $region24: #{tpu_custom_call.1} parent=1 // pred_region
      _
    $region25: #{tpu_custom_call.1} parent=1 // pred_fallthru
      _
    // Predicated region
    $region26: #{tpu_custom_call.1} parent=1 // pred_check
      _
    $region27: #{tpu_custom_call.1} parent=1 // pred_check_branch
      %60 = sbr.rel (0) target = $region29
    $region28: #{tpu_custom_call.1} parent=1 // pred_region
      _
    $region29: #{tpu_custom_call.1} parent=1 // pred_fallthru
      _
    // Predicated region
    $region30: #{tpu_custom_call.1} parent=1 // pred_check
      _
    $region31: #{tpu_custom_call.1} parent=1 // pred_check_branch
      %62 = sbr.rel (0) target = $region33
    $region32: #{tpu_custom_call.1} parent=1 // pred_region
      %64 = dma.done [#allocation4], 128
    $region33: #{tpu_custom_call.1} parent=1 // pred_fallthru
      _
    // Predicated region
    $region34: #{tpu_custom_call.1} parent=1 // pred_check
      _
    $region35: #{tpu_custom_call.1} parent=1 // pred_check_branch
      %66 = sbr.rel (0) target = $region37
    $region36: #{tpu_custom_call.1} parent=1 // pred_region
      %68 = dma.done [#allocation6], 384
    $region37: #{tpu_custom_call.1} parent=1 // pred_fallthru
      _
    // Predicated region
    $region38: #{tpu_custom_call.1} parent=1 // pred_check
      _
    $region39: #{tpu_custom_call.1} parent=1 // pred_check_branch
      %70 = sbr.rel (0) target = $region41
    $region40: #{tpu_custom_call.1} parent=1 // pred_region
      %72 = dma.done [#allocation6], 2048
    $region41: #{tpu_custom_call.1} parent=1 // pred_fallthru
      _
    %v73 = vld [vmem:[#allocation3] sm:$0xff]
    %v74 = vld [vmem:[#allocation5] sm:$0xff]
    %v75 = vld [vmem:[#allocation5 + $0x8] sm:$0xff]
    %v76 = vld [vmem:[#allocation5 + $0x10] sm:$0xff]
    %v77 = vld [vmem:[%s2] sm:$0x1]
    %v79 = vperm.slane %v77, 0
    %vm81 = vcmask 195584
    %v83 = vsel %vm81, %v73, 0
    %85 = vmatpush.msra.mxu0 0.0
    %86 = vmatpush.msra.mxu0 0.0
    %87 = vmatpush.msra.mxu0 0.0
    %88 = vmatpush.msra.mxu0 0.0
    %89 = vmatpush.msra.mxu0 0.0
    %90 = vmatpush.msra.mxu0 0.0
    %91 = vmatpush.msra.mxu0 0.0
    %92 = vmatpush.msra.mxu0 0.0
    %93 = vmatpush.msra.mxu0 0.0
    %94 = vmatpush.msra.mxu0 0.0
    %95 = vmatpush.msra.mxu0 0.0
    %96 = vmatpush.msra.mxu0 0.0
    %97 = vmatpush.msra.mxu0 0.0
    %98 = vmatpush.msra.mxu0 %v76
    %99 = vmatpush.msra.mxu0 %v75
    %100 = vmatpush.msra.mxu0 %v74
    %101 = vmatmul.f32.gmra.mxu0 %v83
    %v102 = vpop.f32.mrf.mxu0
    %v103 = vadd.f32 %v79, %v102
    %104 = vdwg.mxu0
    %v105 = vmax.f32 %v103, 0.0
    %v106 = vld [vmem:[#allocation7] sm:$0xff]
    %v107 = vld [vmem:[#allocation7 + $0x8] sm:$0xff]
    %v108 = vld [vmem:[#allocation7 + $0x10] sm:$0xff]
    %v109 = vld [vmem:[#allocation7 + $0x18] sm:$0xff]
    %v110 = vld [vmem:[#allocation7 + $0x20] sm:$0xff]
    %v111 = vld [vmem:[#allocation7 + $0x28] sm:$0xff]
    %v112 = vld [vmem:[#allocation7 + $0x30] sm:$0xff]
    %v113 = vld [vmem:[#allocation7 + $0x38] sm:$0xff]
    %v114 = vld [vmem:[#allocation7 + $0x40] sm:$0xff]
    %v115 = vld [vmem:[#allocation7 + $0x48] sm:$0xff]
    %v116 = vld [vmem:[#allocation7 + $0x50] sm:$0xff]
    %v117 = vld [vmem:[#allocation7 + $0x58] sm:$0xff]
    %v118 = vld [vmem:[#allocation7 + $0x60] sm:$0xff]
    %v119 = vld [vmem:[#allocation7 + $0x68] sm:$0xff]
    %v120 = vld [vmem:[#allocation7 + $0x70] sm:$0xff]
    %v121 = vld [vmem:[#allocation7 + $0x78] sm:$0xff]
    %v122 = vld [vmem:[%s4] sm:$0x1]
    %v124 = vperm.slane %v122, 0
    %126 = vmatpush.msra.mxu0 %v121
    %127 = vmatpush.msra.mxu0 %v120
    %128 = vmatpush.msra.mxu0 %v119
    %129 = vmatpush.msra.mxu0 %v118
    %130 = vmatpush.msra.mxu0 %v117
    %131 = vmatpush.msra.mxu0 %v116
    %132 = vmatpush.msra.mxu0 %v115
    %133 = vmatpush.msra.mxu0 %v114
    %134 = vmatpush.msra.mxu0 %v113
    %135 = vmatpush.msra.mxu0 %v112
    %136 = vmatpush.msra.mxu0 %v111
    %137 = vmatpush.msra.mxu0 %v110
    %138 = vmatpush.msra.mxu0 %v109
    %139 = vmatpush.msra.mxu0 %v108
    %140 = vmatpush.msra.mxu0 %v107
    %141 = vmatpush.msra.mxu0 %v106
    %142 = vmatmul.f32.gmra.mxu0 %v105
    %v143 = vpop.f32.mrf.mxu0
    %v144 = vadd.f32 %v124, %v143
    %145 = vdwg.mxu0
    %v146 = vmax.f32 %v144, 0.0
    %v147 = vld [vmem:[%s5] sm:$0x1]
    %v149 = vperm.slane %v147, 0
    %v151 = vmul.f32 %v146, %v149
    %152 = vadd.xlane.f32.xlu0 %v151
    %v153 = vpop.xlane.xlu0 %152
    %v154 = vld [vmem:[#allocation2] sm:$0x1]
    %v156 = vperm.slane %v154, 0
    %v158 = vadd.f32 %v153, %v156
    %vm159 = vcmask 7168
    %160 = vst.msk [vmem:[%s7] sm:$0xff] %vm159, %v158
    // Predicated region
    $region42: #{tpu_custom_call.1} parent=1 // pred_check
      _
    $region43: #{tpu_custom_call.1} parent=1 // pred_check_branch
      %162 = sbr.rel (0) target = $region45
    $region44: #{tpu_custom_call.1} parent=1 // pred_region
      _
    $region45: #{tpu_custom_call.1} parent=1 // pred_fallthru
      _
    // Predicated region
    $region46: #{tpu_custom_call.1} parent=1 // pred_check
      _
    $region47: #{tpu_custom_call.1} parent=1 // pred_check_branch
      %164 = sbr.rel (0) target = $region49
    $region48: #{tpu_custom_call.1} parent=1 // pred_region
      _
    $region49: #{tpu_custom_call.1} parent=1 // pred_fallthru
      _
    %165 = vsyncpa [#allocation4], 1
    %166 = vsyncpa [#allocation6], 1

</llo_original>
